<compile_context>
chip_gen: v5e
topology: v5e:2x2
jax: 0.10.0
libtpu: 0.0.40
codegen_flags: <defaults>
</compile_context>

<pallas_src>
import jax
import jax.numpy as jnp
from jax.experimental import pallas as pl
from jax.experimental.pallas import tpu as pltpu


# ----------------------------------------------------------------------------
# kernel
# ----------------------------------------------------------------------------

def _exact_select(x, sel_bf16):
    """x @ sel for a 0/1 selector, exact, with minimal MXU passes.

    float32 x: exact 3-term bf16 decomposition -> three single-pass matmuls.
    bf16/f16 x: one single-pass matmul.  Accumulation in f32; each selector
    column has exactly one '1', so the accumulate never rounds.
    """
    if x.dtype == jnp.float32:
        x0 = x.astype(jnp.bfloat16)
        r1 = x - x0.astype(jnp.float32)
        x1 = r1.astype(jnp.bfloat16)
        x2 = (r1 - x1.astype(jnp.float32)).astype(jnp.bfloat16)
        acc = jnp.dot(x0, sel_bf16, preferred_element_type=jnp.float32)
        acc = acc + jnp.dot(x1, sel_bf16, preferred_element_type=jnp.float32)
        acc = acc + jnp.dot(x2, sel_bf16, preferred_element_type=jnp.float32)
        return acc
    return jnp.dot(x, sel_bf16.astype(x.dtype),
                   preferred_element_type=jnp.float32)


def _select_kernel(x_ref, t_ref, sx_ref, st_ref, ox_ref, ot_ref):
    ox_ref[...] = _exact_select(x_ref[...], sx_ref[...]).astype(ox_ref.dtype)
    ot_ref[...] = _exact_select(t_ref[...], st_ref[...]).astype(ot_ref.dtype)


# ----------------------------------------------------------------------------
# wrapper helpers
# ----------------------------------------------------------------------------

def _round_up(x, m):
    return (x + m - 1) // m * m


def _tpu_generation():
    try:
        kind = jax.devices()[0].device_kind.lower()
    except Exception:
        return 0
    for gen in (7, 6, 5, 4):
        if f"v{gen}" in kind or f"tpu{gen}" in kind:
            return gen
    return 0


def _gen_params(gen):
    """(mxu_n_tile, tile_budget_bytes, tm_cap, min_grid_steps, vmem_limit)."""
    if gen == 6:        # 256x256 MXU, 128 MiB VMEM
        return 256, 28 << 20, 8192, 2, 64 << 20
    if gen == 5:        # 128x128 MXU, 128 MiB VMEM
        return 128, 28 << 20, 8192, 2, 64 << 20
    if gen == 7:        # 256x256 MXU, 64 MiB VMEM, 2 TensorCores
        return 256, 14 << 20, 4096, 4, 40 << 20
    return 128, 12 << 20, 2048, 2, 32 << 20   # unknown / older: conservative


def _choose_fold(positions, cx, ct, nx, nt, n_tile):
    """Fold factor G: positions folded into the lane axis per matmul.

    Largest divisor of `positions` with G*max(nx, nt) inside one MXU N tile
    (keeps the block-diagonal matmul at its MXU-cost floor while maximizing
    output lane density), preferring G that keeps G*C a multiple of 128
    (full K tiles, lane-dense input blocks).
    """
    g_cap = max(1, n_tile // max(nx, nt))
    g_cap = min(g_cap, max(1, 4096 // max(cx, ct)))   # bound selector size
    g_cap = min(g_cap, positions)
    largest = 1
    for g in range(g_cap, 0, -1):
        if positions % g:
            continue
        if (g * cx) % 128 == 0 and (g * ct) % 128 == 0:
            return g
        if largest == 1:
            largest = g
    return largest


def _selection_matrix(c, g, idx):
    """Block-diagonal 0/1 selector (g*c, g*len(idx)) in bf16 (0/1 exact)."""
    n = len(idx)
    cols = jnp.arange(g * n, dtype=jnp.int32)
    src_lane = (cols // n) * c + jnp.asarray(idx, dtype=jnp.int32)[cols % n]
    lanes = jnp.arange(g * c, dtype=jnp.int32)
    return (lanes[:, None] == src_lane[None, :]).astype(jnp.bfloat16)


def _choose_row_tile(rows, bytes_per_row, align, budget, cap, min_steps, tm):
    if tm is None:
        tm = max(align, budget // max(1, bytes_per_row))
    tm = int(min(tm, cap))
    if rows > align * min_steps:
        # keep >= min_steps grid steps (DMA/compute overlap; on v7x this is
        # >= 2 steps per TensorCore once the "parallel" axis is core-sharded)
        tm = min(tm, _round_up(pl.cdiv(rows, min_steps), align))
    if tm >= rows:
        return rows                      # one full-extent block (always legal)
    return max(align, (tm // align) * align)


# ----------------------------------------------------------------------------
# public wrapper
# ----------------------------------------------------------------------------

def base_forward(x_all, t_all, xi, ti, *, tm=None):
    """Pallas equivalent of Base(xi, ti)(x_all, t_all) for (B, A, H, W, C)."""
    assert x_all.ndim == 5 and t_all.ndim == 5
    assert x_all.shape[:4] == t_all.shape[:4], "leading dims must match"
    assert len(xi) > 0 and len(ti) > 0
    for dt in (x_all.dtype, t_all.dtype):
        assert dt in (jnp.float32, jnp.bfloat16, jnp.float16), dt
    # TODO(synk): exact gather semantics for Inf/NaN in *unselected* channels
    # (and -0.0 sign) are not preserved by the MXU one-hot selection.

    b, a, h, w = x_all.shape[:4]
    cx, ct = x_all.shape[-1], t_all.shape[-1]
    xi = tuple(int(i) % cx for i in xi)     # PyTorch-style negative indexing
    ti = tuple(int(i) % ct for i in ti)
    nx, nt = len(xi), len(ti)

    gen = _tpu_generation()
    n_tile, budget, cap, min_steps, vmem_limit = _gen_params(gen)

    positions = b * a * h * w
    g = _choose_fold(positions, cx, ct, nx, nt, n_tile)
    rows = positions // g

    x2 = x_all.reshape(rows, g * cx)        # free reshapes (contiguous)
    t2 = t_all.reshape(rows, g * ct)
    sx = _selection_matrix(cx, g, xi)       # bf16 constants
    st = _selection_matrix(ct, g, ti)

    x_item = jnp.dtype(x_all.dtype).itemsize
    t_item = jnp.dtype(t_all.dtype).itemsize
    in_bytes = g * (cx * x_item + ct * t_item)
    out_bytes = g * (nx * x_item + nt * t_item)
    # f32 inputs get split into 3 bf16 terms in-kernel -> extra VMEM scratch
    split_bytes = (int(2.5 * g * cx * x_item) if x_item == 4 else 0) \
        + (int(2.5 * g * ct * t_item) if t_item == 4 else 0)
    bytes_per_row = 2 * (in_bytes + out_bytes) + split_bytes

    align = max(32 // x_item, 32 // t_item)   # 8 rows f32, 16 bf16/f16
    tm = _choose_row_tile(rows, bytes_per_row, align, budget, cap, min_steps, tm)
    grid = (pl.cdiv(rows, tm),)

    passes_x = 3 if x_all.dtype == jnp.float32 else 1
    passes_t = 3 if t_all.dtype == jnp.float32 else 1
    cost = pl.CostEstimate(
        flops=2 * rows * g * g * (cx * nx * passes_x + ct * nt * passes_t),
        transcendentals=0,
        bytes_accessed=rows * (in_bytes + out_bytes) + 2 * (sx.size + st.size),
    )

    ox2, ot2 = pl.pallas_call(
        _select_kernel,
        out_shape=(
            jax.ShapeDtypeStruct((rows, g * nx), x_all.dtype),
            jax.ShapeDtypeStruct((rows, g * nt), t_all.dtype),
        ),
        grid_spec=pltpu.PrefetchScalarGridSpec(
            num_scalar_prefetch=0,
            grid=grid,
            in_specs=[
                pl.BlockSpec((tm, g * cx), lambda i: (i, 0)),
                pl.BlockSpec((tm, g * ct), lambda i: (i, 0)),
                # small constant selectors, same block every step; <1 MiB even
                # double-buffered, so pl.Buffered(1) is not worth the risk
                pl.BlockSpec((g * cx, g * nx), lambda i: (0, 0)),
                pl.BlockSpec((g * ct, g * nt), lambda i: (0, 0)),
            ],
            out_specs=[
                pl.BlockSpec((tm, g * nx), lambda i: (i, 0)),
                pl.BlockSpec((tm, g * nt), lambda i: (i, 0)),
            ],
        ),
        compiler_params=pltpu.CompilerParams(
            # TODO(synk): on v7x, verify in a profile that the single
            # "parallel" axis is sharded across both TensorCores; if not,
            # switch this axis to pltpu.CORE_PARALLEL.
            dimension_semantics=("parallel",),
            vmem_limit_bytes=vmem_limit,
        ),
        cost_estimate=cost,
    )(x2, t2, sx, st)

    return (ox2.reshape(b, a, h, w, nx), ot2.reshape(b, a, h, w, nt))


if __name__ == "__main__":
    key = jax.random.PRNGKey(0)
    kx, kt = jax.random.split(key)

    # small shapes consistent with the 5D indexing in Base.forward
    B, A, H, W, C = 2, 3, 4, 8, 16
    x_all = jax.random.normal(kx, (B, A, H, W, C), dtype=jnp.float32)
    t_all = jax.random.normal(kt, (B, A, H, W, C), dtype=jnp.float32)

    xi = [0, 2, 5]                      # static index lists (module args)
    ti = [1, 3, 7, -1]                  # includes a negative index

    out_x, out_t = base_forward(x_all, t_all, xi, ti)
    out_x = jax.block_until_ready(out_x)
    out_t = jax.block_until_ready(out_t)

    ref_x = jnp.take(x_all, jnp.array([i % C for i in xi]), axis=-1)
    ref_t = jnp.take(t_all, jnp.array([i % C for i in ti]), axis=-1)
    assert out_x.shape == (B, A, H, W, len(xi))
    assert out_t.shape == (B, A, H, W, len(ti))
    assert jnp.allclose(out_x, ref_x, rtol=1e-6, atol=1e-6)
    assert jnp.allclose(out_t, ref_t, rtol=1e-6, atol=1e-6)

    # bf16 path: single-pass MXU selection + 16-row sublane alignment
    xb = x_all.astype(jnp.bfloat16)
    tb = t_all.astype(jnp.bfloat16)
    ox_b, ot_b = base_forward(xb, tb, xi, ti)
    ox_b = jax.block_until_ready(ox_b)
    ot_b = jax.block_until_ready(ot_b)
    ref_xb = jnp.take(xb, jnp.array([i % C for i in xi]), axis=-1)
    ref_tb = jnp.take(tb, jnp.array([i % C for i in ti]), axis=-1)
    assert jnp.allclose(ox_b.astype(jnp.float32), ref_xb.astype(jnp.float32))
    assert jnp.allclose(ot_b.astype(jnp.float32), ref_tb.astype(jnp.float32))

    print("KERNEL_OK")
</pallas_src>

<mosaic_0001>
module attributes {stable_mosaic.version = 11 : i64} {
  func.func @_select_kernel(%arg0: i32, %arg1: memref<6x512xf32, #tpu.memory_space<vmem>>, %arg2: memref<6x512xf32, #tpu.memory_space<vmem>>, %arg3: memref<512x96xbf16, #tpu.memory_space<vmem>>, %arg4: memref<512x128xbf16, #tpu.memory_space<vmem>>, %arg5: memref<6x96xf32, #tpu.memory_space<vmem>>, %arg6: memref<6x128xf32, #tpu.memory_space<vmem>>) attributes {dimension_semantics = [#tpu.dimension_semantics<parallel>], iteration_bounds = array<i64: 1>, scalar_prefetch = 0 : i64, scratch_operands = 0 : i64, tpu.core_type = #tpu.core_type<tc>, window_params = [{transform_indices = @transform_0, window_bounds = array<i64: 6, 512>}, {transform_indices = @transform_1, window_bounds = array<i64: 6, 512>}, {pipeline_mode = #tpu.pipeline_mode<synchronous>, transform_indices = @transform_2, window_bounds = array<i64: 512, 96>}, {pipeline_mode = #tpu.pipeline_mode<synchronous>, transform_indices = @transform_3, window_bounds = array<i64: 512, 128>}, {transform_indices = @transform_4, window_bounds = array<i64: 6, 96>}, {transform_indices = @transform_5, window_bounds = array<i64: 6, 128>}]} {
    %c0 = arith.constant 0 : index
    %c0_0 = arith.constant 0 : index
    %0 = vector.load %arg1[%c0, %c0_0] : memref<6x512xf32, #tpu.memory_space<vmem>>, vector<6x512xf32>
    %c0_1 = arith.constant 0 : index
    %c0_2 = arith.constant 0 : index
    %1 = vector.load %arg3[%c0_1, %c0_2] : memref<512x96xbf16, #tpu.memory_space<vmem>>, vector<512x96xbf16>
    %2 = arith.truncf %0 : vector<6x512xf32> to vector<6x512xbf16>
    %3 = arith.extf %2 : vector<6x512xbf16> to vector<6x512xf32>
    %4 = arith.subf %0, %3 : vector<6x512xf32>
    %5 = arith.truncf %4 : vector<6x512xf32> to vector<6x512xbf16>
    %6 = arith.extf %5 : vector<6x512xbf16> to vector<6x512xf32>
    %7 = arith.subf %4, %6 : vector<6x512xf32>
    %8 = arith.truncf %7 : vector<6x512xf32> to vector<6x512xbf16>
    %cst = arith.constant dense<0.000000e+00> : vector<6x96xf32>
    %9 = tpu.matmul %2, %1, %cst {dimension_numbers = #tpu.dot_dimension_numbers<[1], [0], [0], [1], [0, 0, 1, 1], [], []>} : vector<6x512xbf16>, vector<512x96xbf16>, vector<6x96xf32> -> vector<6x96xf32>
    %cst_3 = arith.constant dense<0.000000e+00> : vector<6x96xf32>
    %10 = tpu.matmul %5, %1, %cst_3 {dimension_numbers = #tpu.dot_dimension_numbers<[1], [0], [0], [1], [0, 0, 1, 1], [], []>} : vector<6x512xbf16>, vector<512x96xbf16>, vector<6x96xf32> -> vector<6x96xf32>
    %11 = arith.addf %9, %10 : vector<6x96xf32>
    %cst_4 = arith.constant dense<0.000000e+00> : vector<6x96xf32>
    %12 = tpu.matmul %8, %1, %cst_4 {dimension_numbers = #tpu.dot_dimension_numbers<[1], [0], [0], [1], [0, 0, 1, 1], [], []>} : vector<6x512xbf16>, vector<512x96xbf16>, vector<6x96xf32> -> vector<6x96xf32>
    %13 = arith.addf %11, %12 : vector<6x96xf32>
    %c0_5 = arith.constant 0 : index
    %c0_6 = arith.constant 0 : index
    %14 = vector.load %arg5[%c0_5, %c0_6] : memref<6x96xf32, #tpu.memory_space<vmem>>, vector<6x96xf32>
    tpu.vector_store %arg5[%c0_5, %c0_6], %13 {strides = array<i32>} : memref<6x96xf32, #tpu.memory_space<vmem>>, vector<6x96xf32>,
    %c0_7 = arith.constant 0 : index
    %c0_8 = arith.constant 0 : index
    %15 = vector.load %arg2[%c0_7, %c0_8] : memref<6x512xf32, #tpu.memory_space<vmem>>, vector<6x512xf32>
    %c0_9 = arith.constant 0 : index
    %c0_10 = arith.constant 0 : index
    %16 = vector.load %arg4[%c0_9, %c0_10] : memref<512x128xbf16, #tpu.memory_space<vmem>>, vector<512x128xbf16>
    %17 = arith.truncf %15 : vector<6x512xf32> to vector<6x512xbf16>
    %18 = arith.extf %17 : vector<6x512xbf16> to vector<6x512xf32>
    %19 = arith.subf %15, %18 : vector<6x512xf32>
    %20 = arith.truncf %19 : vector<6x512xf32> to vector<6x512xbf16>
    %21 = arith.extf %20 : vector<6x512xbf16> to vector<6x512xf32>
    %22 = arith.subf %19, %21 : vector<6x512xf32>
    %23 = arith.truncf %22 : vector<6x512xf32> to vector<6x512xbf16>
    %cst_11 = arith.constant dense<0.000000e+00> : vector<6x128xf32>
    %24 = tpu.matmul %17, %16, %cst_11 {dimension_numbers = #tpu.dot_dimension_numbers<[1], [0], [0], [1], [0, 0, 1, 1], [], []>} : vector<6x512xbf16>, vector<512x128xbf16>, vector<6x128xf32> -> vector<6x128xf32>
    %cst_12 = arith.constant dense<0.000000e+00> : vector<6x128xf32>
    %25 = tpu.matmul %20, %16, %cst_12 {dimension_numbers = #tpu.dot_dimension_numbers<[1], [0], [0], [1], [0, 0, 1, 1], [], []>} : vector<6x512xbf16>, vector<512x128xbf16>, vector<6x128xf32> -> vector<6x128xf32>
    %26 = arith.addf %24, %25 : vector<6x128xf32>
    %cst_13 = arith.constant dense<0.000000e+00> : vector<6x128xf32>
    %27 = tpu.matmul %23, %16, %cst_13 {dimension_numbers = #tpu.dot_dimension_numbers<[1], [0], [0], [1], [0, 0, 1, 1], [], []>} : vector<6x512xbf16>, vector<512x128xbf16>, vector<6x128xf32> -> vector<6x128xf32>
    %28 = arith.addf %26, %27 : vector<6x128xf32>
    %c0_14 = arith.constant 0 : index
    %c0_15 = arith.constant 0 : index
    %29 = vector.load %arg6[%c0_14, %c0_15] : memref<6x128xf32, #tpu.memory_space<vmem>>, vector<6x128xf32>
    tpu.vector_store %arg6[%c0_14, %c0_15], %28 {strides = array<i32>} : memref<6x128xf32, #tpu.memory_space<vmem>>, vector<6x128xf32>,
    return
  }
  func.func @transform_0(%arg0: i32) -> (i32, i32) {
    %c0_i32 = arith.constant 0 : i32
    %c0_i32_0 = arith.constant 0 : i32
    return %arg0, %c0_i32 : i32, i32
  }
  func.func @transform_1(%arg0: i32) -> (i32, i32) {
    %c0_i32 = arith.constant 0 : i32
    %c0_i32_0 = arith.constant 0 : i32
    return %arg0, %c0_i32 : i32, i32
  }
  func.func @transform_2(%arg0: i32) -> (i32, i32) {
    %c0_i32 = arith.constant 0 : i32
    %c0_i32_0 = arith.constant 0 : i32
    %c0_i32_1 = arith.constant 0 : i32
    return %c0_i32, %c0_i32_0 : i32, i32
  }
  func.func @transform_3(%arg0: i32) -> (i32, i32) {
    %c0_i32 = arith.constant 0 : i32
    %c0_i32_0 = arith.constant 0 : i32
    %c0_i32_1 = arith.constant 0 : i32
    return %c0_i32, %c0_i32_0 : i32, i32
  }
  func.func @transform_4(%arg0: i32) -> (i32, i32) {
    %c0_i32 = arith.constant 0 : i32
    %c0_i32_0 = arith.constant 0 : i32
    return %arg0, %c0_i32 : i32, i32
  }
  func.func @transform_5(%arg0: i32) -> (i32, i32) {
    %c0_i32 = arith.constant 0 : i32
    %c0_i32_0 = arith.constant 0 : i32
    return %arg0, %c0_i32 : i32, i32
  }
}

</mosaic_0001>

<llo_original>
// kernel: tpu_custom_call.1
$region0: #{tpu_custom_call.1}
  #allocation0 [shape = 'u32[]', space=smem, size = 0x4, offset = 0x4, fixed_abs, tag = 'smem constant byte address 0x4 - core index']
  #allocation1 [shape = 'u32[72,128]{1,0:T(1,128)}', space=vmem, size = 0x9000, scoped, tag = 'internal scratch']
  %s0 = inlined_call_operand.vmem [shape: f32[6,512], index: 0, kind: input, shape index: {}]
  %s1 = inlined_call_operand.vmem [shape: f32[6,512], index: 1, kind: input, shape index: {}]
  %s2 = inlined_call_operand.vmem [shape: bf16[512,96], index: 2, kind: input, shape index: {}]
  %s3 = inlined_call_operand.vmem [shape: bf16[512,128], index: 3, kind: input, shape index: {}]
  %s4 = inlined_call_operand.hbm [shape: f32[6,96], index: 4, kind: output, shape index: {0}]
  %s5 = inlined_call_operand.hbm [shape: f32[6,128], index: 5, kind: output, shape index: {1}]
  %6 = xla_tuple %s4, %s5
  %s7 = sld [smem:[#allocation0]]
  $region34: #{tpu_custom_call.1} parent=0
    _
  %s9 = ssub.s32 1, %s7
  %s10 = scalar_select 0, %s9, %s7
  $region1: #{tpu_custom_call.1} parent=0
    #allocation2 [shape = 'u8[4096]{0}', space=vmem, size = 0x1000, scoped, tag = 'output window, operand 0, single buffered']
    #allocation3 [shape = 's32[1]{0}', space=sflag, size = 0x4, scoped, tag = 'scoped memory for tpu_custom_call.1']
    #allocation4 [shape = 'u8[4096]{0}', space=vmem, size = 0x1000, scoped, tag = 'output window, operand 1, single buffered']
    #allocation5 [shape = 's32[1]{0}', space=sflag, size = 0x4, scoped, tag = 'scoped memory for tpu_custom_call.1']
    %11 = vsyncpa [#allocation3], 0
    %12 = vsyncpa [#allocation5], 0
    // Predicated region
    $region2: #{tpu_custom_call.1} parent=1 // pred_check
      _
    $region3: #{tpu_custom_call.1} parent=1 // pred_check_branch
      %14 = sbr.rel (0) target = $region5
    $region4: #{tpu_custom_call.1} parent=1 // pred_region
      _
    $region5: #{tpu_custom_call.1} parent=1 // pred_fallthru
      _
    // Predicated region
    $region6: #{tpu_custom_call.1} parent=1 // pred_check
      _
    $region7: #{tpu_custom_call.1} parent=1 // pred_check_branch
      %16 = sbr.rel (0) target = $region9
    $region8: #{tpu_custom_call.1} parent=1 // pred_region
      _
    $region9: #{tpu_custom_call.1} parent=1 // pred_fallthru
      _
    // Predicated region
    $region10: #{tpu_custom_call.1} parent=1 // pred_check
      _
    $region11: #{tpu_custom_call.1} parent=1 // pred_check_branch
      %18 = sbr.rel (0) target = $region13
    $region12: #{tpu_custom_call.1} parent=1 // pred_region
      _
    $region13: #{tpu_custom_call.1} parent=1 // pred_fallthru
      _
    // Predicated region
    $region14: #{tpu_custom_call.1} parent=1 // pred_check
      _
    $region15: #{tpu_custom_call.1} parent=1 // pred_check_branch
      %20 = sbr.rel (0) target = $region17
    $region16: #{tpu_custom_call.1} parent=1 // pred_region
      _
    $region17: #{tpu_custom_call.1} parent=1 // pred_fallthru
      _
    %v21 = vld [vmem:[%s0] sm:$0x3f]
    %v22 = vld [vmem:[%s0 + $0x8] sm:$0x3f]
    %v23 = vld [vmem:[%s0 + $0x10] sm:$0x3f]
    %v24 = vld [vmem:[%s0 + $0x18] sm:$0x3f]
    %v25 = vld [vmem:[%s2] sm:$0xf]
    %v26 = vld [vmem:[%s2 + $0x4] sm:$0xf]
    %v27 = vld [vmem:[%s2 + $0x8] sm:$0xf]
    %v28 = vld [vmem:[%s2 + $0xc] sm:$0xf]
    %v29 = vld [vmem:[%s2 + $0x10] sm:$0xf]
    %v30 = vld [vmem:[%s2 + $0x14] sm:$0xf]
    %v31 = vld [vmem:[%s2 + $0x18] sm:$0xf]
    %v32 = vld [vmem:[%s2 + $0x1c] sm:$0xf]
    %v33 = vld [vmem:[%s2 + $0x20] sm:$0xf]
    %v34 = vld [vmem:[%s2 + $0x24] sm:$0xf]
    %v35 = vld [vmem:[%s2 + $0x28] sm:$0xf]
    %v36 = vld [vmem:[%s2 + $0x2c] sm:$0xf]
    %v37 = vld [vmem:[%s2 + $0x30] sm:$0xf]
    %v38 = vld [vmem:[%s2 + $0x34] sm:$0xf]
    %v39 = vld [vmem:[%s2 + $0x38] sm:$0xf]
    %v40 = vld [vmem:[%s2 + $0x3c] sm:$0xf]
    %v41 = vld [vmem:[%s2 + $0x40] sm:$0xf]
    %v42 = vld [vmem:[%s2 + $0x44] sm:$0xf]
    %v43 = vld [vmem:[%s2 + $0x48] sm:$0xf]
    %v44 = vld [vmem:[%s2 + $0x4c] sm:$0xf]
    %v45 = vld [vmem:[%s2 + $0x50] sm:$0xf]
    %v46 = vld [vmem:[%s2 + $0x54] sm:$0xf]
    %v47 = vld [vmem:[%s2 + $0x58] sm:$0xf]
    %v48 = vld [vmem:[%s2 + $0x5c] sm:$0xf]
    %v49 = vld [vmem:[%s2 + $0x60] sm:$0xf]
    %v50 = vld [vmem:[%s2 + $0x64] sm:$0xf]
    %v51 = vld [vmem:[%s2 + $0x68] sm:$0xf]
    %v52 = vld [vmem:[%s2 + $0x6c] sm:$0xf]
    %v53 = vld [vmem:[%s2 + $0x70] sm:$0xf]
    %v54 = vld [vmem:[%s2 + $0x74] sm:$0xf]
    %v55 = vld [vmem:[%s2 + $0x78] sm:$0xf]
    %v56 = vld [vmem:[%s2 + $0x7c] sm:$0xf]
    %v57 = vld [vmem:[%s2 + $0x80] sm:$0xf]
    %v58 = vld [vmem:[%s2 + $0x84] sm:$0xf]
    %v59 = vld [vmem:[%s2 + $0x88] sm:$0xf]
    %v60 = vld [vmem:[%s2 + $0x8c] sm:$0xf]
    %v61 = vld [vmem:[%s2 + $0x90] sm:$0xf]
    %v62 = vld [vmem:[%s2 + $0x94] sm:$0xf]
    %v63 = vld [vmem:[%s2 + $0x98] sm:$0xf]
    %v64 = vld [vmem:[%s2 + $0x9c] sm:$0xf]
    %v65 = vld [vmem:[%s2 + $0xa0] sm:$0xf]
    %v66 = vld [vmem:[%s2 + $0xa4] sm:$0xf]
    %v67 = vld [vmem:[%s2 + $0xa8] sm:$0xf]
    %v68 = vld [vmem:[%s2 + $0xac] sm:$0xf]
    %v69 = vld [vmem:[%s2 + $0xb0] sm:$0xf]
    %v70 = vld [vmem:[%s2 + $0xb4] sm:$0xf]
    %v71 = vld [vmem:[%s2 + $0xb8] sm:$0xf]
    %v72 = vld [vmem:[%s2 + $0xbc] sm:$0xf]
    %v73 = vld [vmem:[%s2 + $0xc0] sm:$0xf]
    %v74 = vld [vmem:[%s2 + $0xc4] sm:$0xf]
    %v75 = vld [vmem:[%s2 + $0xc8] sm:$0xf]
    %v76 = vld [vmem:[%s2 + $0xcc] sm:$0xf]
    %v77 = vld [vmem:[%s2 + $0xd0] sm:$0xf]
    %v78 = vld [vmem:[%s2 + $0xd4] sm:$0xf]
    %v79 = vld [vmem:[%s2 + $0xd8] sm:$0xf]
    %v80 = vld [vmem:[%s2 + $0xdc] sm:$0xf]
    %v81 = vld [vmem:[%s2 + $0xe0] sm:$0xf]
    %v82 = vld [vmem:[%s2 + $0xe4] sm:$0xf]
    %v83 = vld [vmem:[%s2 + $0xe8] sm:$0xf]
    %v84 = vld [vmem:[%s2 + $0xec] sm:$0xf]
    %v85 = vld [vmem:[%s2 + $0xf0] sm:$0xf]
    %v86 = vld [vmem:[%s2 + $0xf4] sm:$0xf]
    %v87 = vld [vmem:[%s2 + $0xf8] sm:$0xf]
    %v88 = vld [vmem:[%s2 + $0xfc] sm:$0xf]
    %v89 = vpack.c.bf16 %v22, %v21
    %v90 = vpack.c.bf16 %v24, %v23
    %v91 = vunpack.c.l.bf16 %v89
    %v92 = vunpack.c.h.bf16 %v89
    %v93 = vunpack.c.l.bf16 %v90
    %v94 = vunpack.c.h.bf16 %v90
    %v95 = vsub.f32 %v21, %v91
    %v96 = vsub.f32 %v22, %v92
    %v97 = vsub.f32 %v23, %v93
    %v98 = vsub.f32 %v24, %v94
    %v99 = vpack.c.bf16 %v96, %v95
    %v100 = vpack.c.bf16 %v98, %v97
    %v101 = vunpack.c.l.bf16 %v99
    %v102 = vunpack.c.h.bf16 %v99
    %v103 = vunpack.c.l.bf16 %v100
    %v104 = vunpack.c.h.bf16 %v100
    %v105 = vsub.f32 %v95, %v101
    %v106 = vsub.f32 %v96, %v102
    %v107 = vsub.f32 %v97, %v103
    %v108 = vsub.f32 %v98, %v104
    %v109 = vpack.c.bf16 %v105, %v105
    %v110 = vpack.c.bf16 %v106, %v106
    %v111 = vpack.c.bf16 %v107, %v107
    %v112 = vpack.c.bf16 %v108, %v108
    %v115 = vunpack.c.l.b16 %v99
    %v116 = vunpack.c.h.b16 %v99
    %v117 = vunpack.c.l.b16 %v100
    %v118 = vunpack.c.h.b16 %v100
    %v119 = vpack.c.b16 %v115, %v115
    %v120 = vpack.c.b16 %v116, %v116
    %v121 = vpack.c.b16 %v117, %v117
    %v122 = vpack.c.b16 %v118, %v118
    %v191 = vunpack.c.l.b16 %v25
    %v192 = vunpack.c.l.b16 %v26
    %v193 = vunpack.c.l.b16 %v27
    %v194 = vunpack.c.l.b16 %v28
    %v195 = vunpack.c.l.b16 %v29
    %v196 = vunpack.c.l.b16 %v30
    %v197 = vunpack.c.l.b16 %v31
    %v198 = vunpack.c.l.b16 %v32
    %v199 = vunpack.c.l.b16 %v33
    %v200 = vunpack.c.l.b16 %v34
    %v201 = vunpack.c.l.b16 %v35
    %v202 = vunpack.c.l.b16 %v36
    %v203 = vunpack.c.l.b16 %v37
    %v204 = vunpack.c.l.b16 %v38
    %v205 = vunpack.c.l.b16 %v39
    %v206 = vunpack.c.l.b16 %v40
    %v207 = vunpack.c.l.b16 %v41
    %v208 = vunpack.c.l.b16 %v42
    %v209 = vunpack.c.l.b16 %v43
    %v210 = vunpack.c.l.b16 %v44
    %v211 = vunpack.c.l.b16 %v45
    %v212 = vunpack.c.l.b16 %v46
    %v213 = vunpack.c.l.b16 %v47
    %v214 = vunpack.c.l.b16 %v48
    %v215 = vunpack.c.l.b16 %v49
    %v216 = vunpack.c.l.b16 %v50
    %v217 = vunpack.c.l.b16 %v51
    %v218 = vunpack.c.l.b16 %v52
    %v219 = vunpack.c.l.b16 %v53
    %v220 = vunpack.c.l.b16 %v54
    %v221 = vunpack.c.l.b16 %v55
    %v222 = vunpack.c.l.b16 %v56
    %v223 = vunpack.c.l.b16 %v57
    %v224 = vunpack.c.l.b16 %v58
    %v225 = vunpack.c.l.b16 %v59
    %v226 = vunpack.c.l.b16 %v60
    %v227 = vunpack.c.l.b16 %v61
    %v228 = vunpack.c.l.b16 %v62
    %v229 = vunpack.c.l.b16 %v63
    %v230 = vunpack.c.l.b16 %v64
    %v231 = vunpack.c.l.b16 %v65
    %v232 = vunpack.c.l.b16 %v66
    %v233 = vunpack.c.l.b16 %v67
    %v234 = vunpack.c.l.b16 %v68
    %v235 = vunpack.c.l.b16 %v69
    %v236 = vunpack.c.l.b16 %v70
    %v237 = vunpack.c.l.b16 %v71
    %v238 = vunpack.c.l.b16 %v72
    %v239 = vunpack.c.l.b16 %v73
    %v240 = vunpack.c.l.b16 %v74
    %v241 = vunpack.c.l.b16 %v75
    %v242 = vunpack.c.l.b16 %v76
    %v243 = vunpack.c.l.b16 %v77
    %v244 = vunpack.c.l.b16 %v78
    %v245 = vunpack.c.l.b16 %v79
    %v246 = vunpack.c.l.b16 %v80
    %v247 = vunpack.c.l.b16 %v81
    %v248 = vunpack.c.l.b16 %v82
    %v249 = vunpack.c.l.b16 %v83
    %v250 = vunpack.c.l.b16 %v84
    %v251 = vunpack.c.l.b16 %v85
    %v252 = vunpack.c.l.b16 %v86
    %v253 = vunpack.c.l.b16 %v87
    %v254 = vunpack.c.l.b16 %v88
    %v255 = vpack.c.b16 %v192, %v191
    %v256 = vpack.c.b16 %v194, %v193
    %v257 = vpack.c.b16 %v196, %v195
    %v258 = vpack.c.b16 %v198, %v197
    %v259 = vpack.c.b16 %v200, %v199
    %v260 = vpack.c.b16 %v202, %v201
    %v261 = vpack.c.b16 %v204, %v203
    %v262 = vpack.c.b16 %v206, %v205
    %v263 = vpack.c.b16 %v208, %v207
    %v264 = vpack.c.b16 %v210, %v209
    %v265 = vpack.c.b16 %v212, %v211
    %v266 = vpack.c.b16 %v214, %v213
    %v267 = vpack.c.b16 %v216, %v215
    %v268 = vpack.c.b16 %v218, %v217
    %v269 = vpack.c.b16 %v220, %v219
    %v270 = vpack.c.b16 %v222, %v221
    %v271 = vpack.c.b16 %v224, %v223
    %v272 = vpack.c.b16 %v226, %v225
    %v273 = vpack.c.b16 %v228, %v227
    %v274 = vpack.c.b16 %v230, %v229
    %v275 = vpack.c.b16 %v232, %v231
    %v276 = vpack.c.b16 %v234, %v233
    %v277 = vpack.c.b16 %v236, %v235
    %v278 = vpack.c.b16 %v238, %v237
    %v279 = vpack.c.b16 %v240, %v239
    %v280 = vpack.c.b16 %v242, %v241
    %v281 = vpack.c.b16 %v244, %v243
    %v282 = vpack.c.b16 %v246, %v245
    %v283 = vpack.c.b16 %v248, %v247
    %v284 = vpack.c.b16 %v250, %v249
    %v285 = vpack.c.b16 %v252, %v251
    %v286 = vpack.c.b16 %v254, %v253
    %319 = vmatpush.bf16.msra.mxu0 %v262
    %320 = vmatpush.bf16.msra.mxu0 %v261
    %321 = vmatpush.bf16.msra.mxu0 %v260
    %322 = vmatpush.bf16.msra.mxu0 %v259
    %323 = vmatpush.bf16.msra.mxu0 %v258
    %324 = vmatpush.bf16.msra.mxu0 %v257
    %325 = vmatpush.bf16.msra.mxu0 %v256
    %326 = vmatpush.bf16.msra.mxu0 %v255
    %327 = vmatmul.bf16.gmra.mxu0 %v119
    %v328 = vpop.f32.mrf.mxu0
    %v329 = vadd.f32 0.0, %v328
    %v330 = vpop.f32.mrf.mxu0
    %331 = vdwg.mxu0
    %332 = vmatpush.bf16.msra.mxu0 %v270
    %333 = vmatpush.bf16.msra.mxu0 %v269
    %334 = vmatpush.bf16.msra.mxu0 %v268
    %335 = vmatpush.bf16.msra.mxu0 %v267
    %336 = vmatpush.bf16.msra.mxu0 %v266
    %337 = vmatpush.bf16.msra.mxu0 %v265
    %338 = vmatpush.bf16.msra.mxu0 %v264
    %339 = vmatpush.bf16.msra.mxu0 %v263
    %340 = vmatmul.bf16.gmra.mxu0 %v120
    %v341 = vpop.f32.mrf.mxu0
    %v342 = vadd.f32 %v329, %v341
    %v343 = vpop.f32.mrf.mxu0
    %344 = vdwg.mxu0
    %345 = vmatpush.bf16.msra.mxu0 %v278
    %346 = vmatpush.bf16.msra.mxu0 %v277
    %347 = vmatpush.bf16.msra.mxu0 %v276
    %348 = vmatpush.bf16.msra.mxu0 %v275
    %349 = vmatpush.bf16.msra.mxu0 %v274
    %350 = vmatpush.bf16.msra.mxu0 %v273
    %351 = vmatpush.bf16.msra.mxu0 %v272
    %352 = vmatpush.bf16.msra.mxu0 %v271
    %353 = vmatmul.bf16.gmra.mxu0 %v121
    %v354 = vpop.f32.mrf.mxu0
    %v355 = vadd.f32 %v342, %v354
    %v356 = vpop.f32.mrf.mxu0
    %357 = vdwg.mxu0
    %358 = vmatpush.bf16.msra.mxu0 %v286
    %359 = vmatpush.bf16.msra.mxu0 %v285
    %360 = vmatpush.bf16.msra.mxu0 %v284
    %361 = vmatpush.bf16.msra.mxu0 %v283
    %362 = vmatpush.bf16.msra.mxu0 %v282
    %363 = vmatpush.bf16.msra.mxu0 %v281
    %364 = vmatpush.bf16.msra.mxu0 %v280
    %365 = vmatpush.bf16.msra.mxu0 %v279
    %366 = vmatmul.bf16.gmra.mxu0 %v122
    %v367 = vpop.f32.mrf.mxu0
    %v368 = vadd.f32 %v355, %v367
    %v369 = vpop.f32.mrf.mxu0
    %370 = vdwg.mxu0
    %v373 = vunpack.c.l.b16 %v89
    %v374 = vunpack.c.h.b16 %v89
    %v375 = vunpack.c.l.b16 %v90
    %v376 = vunpack.c.h.b16 %v90
    %v377 = vpack.c.b16 %v373, %v373
    %v378 = vpack.c.b16 %v374, %v374
    %v379 = vpack.c.b16 %v375, %v375
    %v380 = vpack.c.b16 %v376, %v376
    %385 = vmatpush.bf16.msra.mxu0 %v262
    %386 = vmatpush.bf16.msra.mxu0 %v261
    %387 = vmatpush.bf16.msra.mxu0 %v260
    %388 = vmatpush.bf16.msra.mxu0 %v259
    %389 = vmatpush.bf16.msra.mxu0 %v258
    %390 = vmatpush.bf16.msra.mxu0 %v257
    %391 = vmatpush.bf16.msra.mxu0 %v256
    %392 = vmatpush.bf16.msra.mxu0 %v255
    %393 = vmatmul.bf16.gmra.mxu0 %v377
    %v394 = vpop.f32.mrf.mxu0
    %v395 = vadd.f32 %v368, %v394
    %v396 = vpop.f32.mrf.mxu0
    %397 = vdwg.mxu0
    %398 = vmatpush.bf16.msra.mxu0 %v270
    %399 = vmatpush.bf16.msra.mxu0 %v269
    %400 = vmatpush.bf16.msra.mxu0 %v268
    %401 = vmatpush.bf16.msra.mxu0 %v267
    %402 = vmatpush.bf16.msra.mxu0 %v266
    %403 = vmatpush.bf16.msra.mxu0 %v265
    %404 = vmatpush.bf16.msra.mxu0 %v264
    %405 = vmatpush.bf16.msra.mxu0 %v263
    %406 = vmatmul.bf16.gmra.mxu0 %v378
    %v407 = vpop.f32.mrf.mxu0
    %v408 = vadd.f32 %v395, %v407
    %v409 = vpop.f32.mrf.mxu0
    %410 = vdwg.mxu0
    %411 = vmatpush.bf16.msra.mxu0 %v278
    %412 = vmatpush.bf16.msra.mxu0 %v277
    %413 = vmatpush.bf16.msra.mxu0 %v276
    %414 = vmatpush.bf16.msra.mxu0 %v275
    %415 = vmatpush.bf16.msra.mxu0 %v274
    %416 = vmatpush.bf16.msra.mxu0 %v273
    %417 = vmatpush.bf16.msra.mxu0 %v272
    %418 = vmatpush.bf16.msra.mxu0 %v271
    %419 = vmatmul.bf16.gmra.mxu0 %v379
    %v420 = vpop.f32.mrf.mxu0
    %v421 = vadd.f32 %v408, %v420
    %v422 = vpop.f32.mrf.mxu0
    %423 = vdwg.mxu0
    %424 = vmatpush.bf16.msra.mxu0 %v286
    %425 = vmatpush.bf16.msra.mxu0 %v285
    %426 = vmatpush.bf16.msra.mxu0 %v284
    %427 = vmatpush.bf16.msra.mxu0 %v283
    %428 = vmatpush.bf16.msra.mxu0 %v282
    %429 = vmatpush.bf16.msra.mxu0 %v281
    %430 = vmatpush.bf16.msra.mxu0 %v280
    %431 = vmatpush.bf16.msra.mxu0 %v279
    %432 = vmatmul.bf16.gmra.mxu0 %v380
    %v433 = vpop.f32.mrf.mxu0
    %v434 = vadd.f32 %v421, %v433
    %v435 = vpop.f32.mrf.mxu0
    %436 = vdwg.mxu0
    %437 = vmatpush.bf16.msra.mxu0 %v262
    %438 = vmatpush.bf16.msra.mxu0 %v261
    %439 = vmatpush.bf16.msra.mxu0 %v260
    %440 = vmatpush.bf16.msra.mxu0 %v259
    %441 = vmatpush.bf16.msra.mxu0 %v258
    %442 = vmatpush.bf16.msra.mxu0 %v257
    %443 = vmatpush.bf16.msra.mxu0 %v256
    %444 = vmatpush.bf16.msra.mxu0 %v255
    %445 = vmatmul.bf16.gmra.mxu0 %v109
    %v446 = vpop.f32.mrf.mxu0
    %v447 = vadd.f32 0.0, %v446
    %v448 = vpop.f32.mrf.mxu0
    %449 = vdwg.mxu0
    %450 = vmatpush.bf16.msra.mxu0 %v270
    %451 = vmatpush.bf16.msra.mxu0 %v269
    %452 = vmatpush.bf16.msra.mxu0 %v268
    %453 = vmatpush.bf16.msra.mxu0 %v267
    %454 = vmatpush.bf16.msra.mxu0 %v266
    %455 = vmatpush.bf16.msra.mxu0 %v265
    %456 = vmatpush.bf16.msra.mxu0 %v264
    %457 = vmatpush.bf16.msra.mxu0 %v263
    %458 = vmatmul.bf16.gmra.mxu0 %v110
    %v459 = vpop.f32.mrf.mxu0
    %v460 = vadd.f32 %v447, %v459
    %v461 = vpop.f32.mrf.mxu0
    %462 = vdwg.mxu0
    %463 = vmatpush.bf16.msra.mxu0 %v278
    %464 = vmatpush.bf16.msra.mxu0 %v277
    %465 = vmatpush.bf16.msra.mxu0 %v276
    %466 = vmatpush.bf16.msra.mxu0 %v275
    %467 = vmatpush.bf16.msra.mxu0 %v274
    %468 = vmatpush.bf16.msra.mxu0 %v273
    %469 = vmatpush.bf16.msra.mxu0 %v272
    %470 = vmatpush.bf16.msra.mxu0 %v271
    %471 = vmatmul.bf16.gmra.mxu0 %v111
    %v472 = vpop.f32.mrf.mxu0
    %v473 = vadd.f32 %v460, %v472
    %v474 = vpop.f32.mrf.mxu0
    %475 = vdwg.mxu0
    %476 = vmatpush.bf16.msra.mxu0 %v286
    %477 = vmatpush.bf16.msra.mxu0 %v285
    %478 = vmatpush.bf16.msra.mxu0 %v284
    %479 = vmatpush.bf16.msra.mxu0 %v283
    %480 = vmatpush.bf16.msra.mxu0 %v282
    %481 = vmatpush.bf16.msra.mxu0 %v281
    %482 = vmatpush.bf16.msra.mxu0 %v280
    %483 = vmatpush.bf16.msra.mxu0 %v279
    %484 = vmatmul.bf16.gmra.mxu0 %v112
    %v485 = vpop.f32.mrf.mxu0
    %v486 = vadd.f32 %v473, %v485
    %v487 = vpop.f32.mrf.mxu0
    %488 = vdwg.mxu0
    %v489 = vadd.f32 %v434, %v486
    %vm490 = vcmask 783360
    %491 = vst.msk [vmem:[#allocation2] sm:$0x3f] %vm490, %v489
    %v492 = vld [vmem:[%s1] sm:$0x3f]
    %v493 = vld [vmem:[%s1 + $0x8] sm:$0x3f]
    %v494 = vld [vmem:[%s1 + $0x10] sm:$0x3f]
    %v495 = vld [vmem:[%s1 + $0x18] sm:$0x3f]
    %v496 = vld [vmem:[%s3] sm:$0xf]
    %v497 = vld [vmem:[%s3 + $0x4] sm:$0xf]
    %v498 = vld [vmem:[%s3 + $0x8] sm:$0xf]
    %v499 = vld [vmem:[%s3 + $0xc] sm:$0xf]
    %v500 = vld [vmem:[%s3 + $0x10] sm:$0xf]
    %v501 = vld [vmem:[%s3 + $0x14] sm:$0xf]
    %v502 = vld [vmem:[%s3 + $0x18] sm:$0xf]
    %v503 = vld [vmem:[%s3 + $0x1c] sm:$0xf]
    %v504 = vld [vmem:[%s3 + $0x20] sm:$0xf]
    %v505 = vld [vmem:[%s3 + $0x24] sm:$0xf]
    %v506 = vld [vmem:[%s3 + $0x28] sm:$0xf]
    %v507 = vld [vmem:[%s3 + $0x2c] sm:$0xf]
    %v508 = vld [vmem:[%s3 + $0x30] sm:$0xf]
    %v509 = vld [vmem:[%s3 + $0x34] sm:$0xf]
    %v510 = vld [vmem:[%s3 + $0x38] sm:$0xf]
    %v511 = vld [vmem:[%s3 + $0x3c] sm:$0xf]
    %v512 = vld [vmem:[%s3 + $0x40] sm:$0xf]
    %v513 = vld [vmem:[%s3 + $0x44] sm:$0xf]
    %v514 = vld [vmem:[%s3 + $0x48] sm:$0xf]
    %v515 = vld [vmem:[%s3 + $0x4c] sm:$0xf]
    %v516 = vld [vmem:[%s3 + $0x50] sm:$0xf]
    %v517 = vld [vmem:[%s3 + $0x54] sm:$0xf]
    %v518 = vld [vmem:[%s3 + $0x58] sm:$0xf]
    %v519 = vld [vmem:[%s3 + $0x5c] sm:$0xf]
    %v520 = vld [vmem:[%s3 + $0x60] sm:$0xf]
    %v521 = vld [vmem:[%s3 + $0x64] sm:$0xf]
    %v522 = vld [vmem:[%s3 + $0x68] sm:$0xf]
    %v523 = vld [vmem:[%s3 + $0x6c] sm:$0xf]
    %v524 = vld [vmem:[%s3 + $0x70] sm:$0xf]
    %v525 = vld [vmem:[%s3 + $0x74] sm:$0xf]
    %v526 = vld [vmem:[%s3 + $0x78] sm:$0xf]
    %v527 = vld [vmem:[%s3 + $0x7c] sm:$0xf]
    %v528 = vld [vmem:[%s3 + $0x80] sm:$0xf]
    %v529 = vld [vmem:[%s3 + $0x84] sm:$0xf]
    %v530 = vld [vmem:[%s3 + $0x88] sm:$0xf]
    %v531 = vld [vmem:[%s3 + $0x8c] sm:$0xf]
    %v532 = vld [vmem:[%s3 + $0x90] sm:$0xf]
    %v533 = vld [vmem:[%s3 + $0x94] sm:$0xf]
    %v534 = vld [vmem:[%s3 + $0x98] sm:$0xf]
    %v535 = vld [vmem:[%s3 + $0x9c] sm:$0xf]
    %v536 = vld [vmem:[%s3 + $0xa0] sm:$0xf]
    %v537 = vld [vmem:[%s3 + $0xa4] sm:$0xf]
    %v538 = vld [vmem:[%s3 + $0xa8] sm:$0xf]
    %v539 = vld [vmem:[%s3 + $0xac] sm:$0xf]
    %v540 = vld [vmem:[%s3 + $0xb0] sm:$0xf]
    %v541 = vld [vmem:[%s3 + $0xb4] sm:$0xf]
    %v542 = vld [vmem:[%s3 + $0xb8] sm:$0xf]
    %v543 = vld [vmem:[%s3 + $0xbc] sm:$0xf]
    %v544 = vld [vmem:[%s3 + $0xc0] sm:$0xf]
    %v545 = vld [vmem:[%s3 + $0xc4] sm:$0xf]
    %v546 = vld [vmem:[%s3 + $0xc8] sm:$0xf]
    %v547 = vld [vmem:[%s3 + $0xcc] sm:$0xf]
    %v548 = vld [vmem:[%s3 + $0xd0] sm:$0xf]
    %v549 = vld [vmem:[%s3 + $0xd4] sm:$0xf]
    %v550 = vld [vmem:[%s3 + $0xd8] sm:$0xf]
    %v551 = vld [vmem:[%s3 + $0xdc] sm:$0xf]
    %v552 = vld [vmem:[%s3 + $0xe0] sm:$0xf]
    %v553 = vld [vmem:[%s3 + $0xe4] sm:$0xf]
    %v554 = vld [vmem:[%s3 + $0xe8] sm:$0xf]
    %v555 = vld [vmem:[%s3 + $0xec] sm:$0xf]
    %v556 = vld [vmem:[%s3 + $0xf0] sm:$0xf]
    %v557 = vld [vmem:[%s3 + $0xf4] sm:$0xf]
    %v558 = vld [vmem:[%s3 + $0xf8] sm:$0xf]
    %v559 = vld [vmem:[%s3 + $0xfc] sm:$0xf]
    %v560 = vpack.c.bf16 %v493, %v492
    %v561 = vpack.c.bf16 %v495, %v494
    %v562 = vunpack.c.l.bf16 %v560
    %v563 = vunpack.c.h.bf16 %v560
    %v564 = vunpack.c.l.bf16 %v561
    %v565 = vunpack.c.h.bf16 %v561
    %v566 = vsub.f32 %v492, %v562
    %v567 = vsub.f32 %v493, %v563
    %v568 = vsub.f32 %v494, %v564
    %v569 = vsub.f32 %v495, %v565
    %v570 = vpack.c.bf16 %v567, %v566
    %v571 = vpack.c.bf16 %v569, %v568
    %v572 = vunpack.c.l.bf16 %v570
    %v573 = vunpack.c.h.bf16 %v570
    %v574 = vunpack.c.l.bf16 %v571
    %v575 = vunpack.c.h.bf16 %v571
    %v576 = vsub.f32 %v566, %v572
    %v577 = vsub.f32 %v567, %v573
    %v578 = vsub.f32 %v568, %v574
    %v579 = vsub.f32 %v569, %v575
    %v580 = vpack.c.bf16 %v576, %v576
    %v581 = vpack.c.bf16 %v577, %v577
    %v582 = vpack.c.bf16 %v578, %v578
    %v583 = vpack.c.bf16 %v579, %v579
    %v586 = vunpack.c.l.b16 %v570
    %v587 = vunpack.c.h.b16 %v570
    %v588 = vunpack.c.l.b16 %v571
    %v589 = vunpack.c.h.b16 %v571
    %v590 = vpack.c.b16 %v586, %v586
    %v591 = vpack.c.b16 %v587, %v587
    %v592 = vpack.c.b16 %v588, %v588
    %v593 = vpack.c.b16 %v589, %v589
    %v662 = vunpack.c.l.b16 %v496
    %v663 = vunpack.c.l.b16 %v497
    %v664 = vunpack.c.l.b16 %v498
    %v665 = vunpack.c.l.b16 %v499
    %v666 = vunpack.c.l.b16 %v500
    %v667 = vunpack.c.l.b16 %v501
    %v668 = vunpack.c.l.b16 %v502
    %v669 = vunpack.c.l.b16 %v503
    %v670 = vunpack.c.l.b16 %v504
    %v671 = vunpack.c.l.b16 %v505
    %v672 = vunpack.c.l.b16 %v506
    %v673 = vunpack.c.l.b16 %v507
    %v674 = vunpack.c.l.b16 %v508
    %v675 = vunpack.c.l.b16 %v509
    %v676 = vunpack.c.l.b16 %v510
    %v677 = vunpack.c.l.b16 %v511
    %v678 = vunpack.c.l.b16 %v512
    %v679 = vunpack.c.l.b16 %v513
    %v680 = vunpack.c.l.b16 %v514
    %v681 = vunpack.c.l.b16 %v515
    %v682 = vunpack.c.l.b16 %v516
    %v683 = vunpack.c.l.b16 %v517
    %v684 = vunpack.c.l.b16 %v518
    %v685 = vunpack.c.l.b16 %v519
    %v686 = vunpack.c.l.b16 %v520
    %v687 = vunpack.c.l.b16 %v521
    %v688 = vunpack.c.l.b16 %v522
    %v689 = vunpack.c.l.b16 %v523
    %v690 = vunpack.c.l.b16 %v524
    %v691 = vunpack.c.l.b16 %v525
    %v692 = vunpack.c.l.b16 %v526
    %v693 = vunpack.c.l.b16 %v527
    %v694 = vunpack.c.l.b16 %v528
    %v695 = vunpack.c.l.b16 %v529
    %v696 = vunpack.c.l.b16 %v530
    %v697 = vunpack.c.l.b16 %v531
    %v698 = vunpack.c.l.b16 %v532
    %v699 = vunpack.c.l.b16 %v533
    %v700 = vunpack.c.l.b16 %v534
    %v701 = vunpack.c.l.b16 %v535
    %v702 = vunpack.c.l.b16 %v536
    %v703 = vunpack.c.l.b16 %v537
    %v704 = vunpack.c.l.b16 %v538
    %v705 = vunpack.c.l.b16 %v539
    %v706 = vunpack.c.l.b16 %v540
    %v707 = vunpack.c.l.b16 %v541
    %v708 = vunpack.c.l.b16 %v542
    %v709 = vunpack.c.l.b16 %v543
    %v710 = vunpack.c.l.b16 %v544
    %v711 = vunpack.c.l.b16 %v545
    %v712 = vunpack.c.l.b16 %v546
    %v713 = vunpack.c.l.b16 %v547
    %v714 = vunpack.c.l.b16 %v548
    %v715 = vunpack.c.l.b16 %v549
    %v716 = vunpack.c.l.b16 %v550
    %v717 = vunpack.c.l.b16 %v551
    %v718 = vunpack.c.l.b16 %v552
    %v719 = vunpack.c.l.b16 %v553
    %v720 = vunpack.c.l.b16 %v554
    %v721 = vunpack.c.l.b16 %v555
    %v722 = vunpack.c.l.b16 %v556
    %v723 = vunpack.c.l.b16 %v557
    %v724 = vunpack.c.l.b16 %v558
    %v725 = vunpack.c.l.b16 %v559
    %v726 = vpack.c.b16 %v663, %v662
    %v727 = vpack.c.b16 %v665, %v664
    %v728 = vpack.c.b16 %v667, %v666
    %v729 = vpack.c.b16 %v669, %v668
    %v730 = vpack.c.b16 %v671, %v670
    %v731 = vpack.c.b16 %v673, %v672
    %v732 = vpack.c.b16 %v675, %v674
    %v733 = vpack.c.b16 %v677, %v676
    %v734 = vpack.c.b16 %v679, %v678
    %v735 = vpack.c.b16 %v681, %v680
    %v736 = vpack.c.b16 %v683, %v682
    %v737 = vpack.c.b16 %v685, %v684
    %v738 = vpack.c.b16 %v687, %v686
    %v739 = vpack.c.b16 %v689, %v688
    %v740 = vpack.c.b16 %v691, %v690
    %v741 = vpack.c.b16 %v693, %v692
    %v742 = vpack.c.b16 %v695, %v694
    %v743 = vpack.c.b16 %v697, %v696
    %v744 = vpack.c.b16 %v699, %v698
    %v745 = vpack.c.b16 %v701, %v700
    %v746 = vpack.c.b16 %v703, %v702
    %v747 = vpack.c.b16 %v705, %v704
    %v748 = vpack.c.b16 %v707, %v706
    %v749 = vpack.c.b16 %v709, %v708
    %v750 = vpack.c.b16 %v711, %v710
    %v751 = vpack.c.b16 %v713, %v712
    %v752 = vpack.c.b16 %v715, %v714
    %v753 = vpack.c.b16 %v717, %v716
    %v754 = vpack.c.b16 %v719, %v718
    %v755 = vpack.c.b16 %v721, %v720
    %v756 = vpack.c.b16 %v723, %v722
    %v757 = vpack.c.b16 %v725, %v724
    %790 = vmatpush.bf16.msra.mxu0 %v733
    %791 = vmatpush.bf16.msra.mxu0 %v732
    %792 = vmatpush.bf16.msra.mxu0 %v731
    %793 = vmatpush.bf16.msra.mxu0 %v730
    %794 = vmatpush.bf16.msra.mxu0 %v729
    %795 = vmatpush.bf16.msra.mxu0 %v728
    %796 = vmatpush.bf16.msra.mxu0 %v727
    %797 = vmatpush.bf16.msra.mxu0 %v726
    %798 = vmatmul.bf16.gmra.mxu0 %v590
    %v799 = vpop.f32.mrf.mxu0
    %v800 = vadd.f32 0.0, %v799
    %v801 = vpop.f32.mrf.mxu0
    %802 = vdwg.mxu0
    %803 = vmatpush.bf16.msra.mxu0 %v741
    %804 = vmatpush.bf16.msra.mxu0 %v740
    %805 = vmatpush.bf16.msra.mxu0 %v739
    %806 = vmatpush.bf16.msra.mxu0 %v738
    %807 = vmatpush.bf16.msra.mxu0 %v737
    %808 = vmatpush.bf16.msra.mxu0 %v736
    %809 = vmatpush.bf16.msra.mxu0 %v735
    %810 = vmatpush.bf16.msra.mxu0 %v734
    %811 = vmatmul.bf16.gmra.mxu0 %v591
    %v812 = vpop.f32.mrf.mxu0
    %v813 = vadd.f32 %v800, %v812
    %v814 = vpop.f32.mrf.mxu0
    %815 = vdwg.mxu0
    %816 = vmatpush.bf16.msra.mxu0 %v749
    %817 = vmatpush.bf16.msra.mxu0 %v748
    %818 = vmatpush.bf16.msra.mxu0 %v747
    %819 = vmatpush.bf16.msra.mxu0 %v746
    %820 = vmatpush.bf16.msra.mxu0 %v745
    %821 = vmatpush.bf16.msra.mxu0 %v744
    %822 = vmatpush.bf16.msra.mxu0 %v743
    %823 = vmatpush.bf16.msra.mxu0 %v742
    %824 = vmatmul.bf16.gmra.mxu0 %v592
    %v825 = vpop.f32.mrf.mxu0
    %v826 = vadd.f32 %v813, %v825
    %v827 = vpop.f32.mrf.mxu0
    %828 = vdwg.mxu0
    %829 = vmatpush.bf16.msra.mxu0 %v757
    %830 = vmatpush.bf16.msra.mxu0 %v756
    %831 = vmatpush.bf16.msra.mxu0 %v755
    %832 = vmatpush.bf16.msra.mxu0 %v754
    %833 = vmatpush.bf16.msra.mxu0 %v753
    %834 = vmatpush.bf16.msra.mxu0 %v752
    %835 = vmatpush.bf16.msra.mxu0 %v751
    %836 = vmatpush.bf16.msra.mxu0 %v750
    %837 = vmatmul.bf16.gmra.mxu0 %v593
    %v838 = vpop.f32.mrf.mxu0
    %v839 = vadd.f32 %v826, %v838
    %v840 = vpop.f32.mrf.mxu0
    %841 = vdwg.mxu0
    %v844 = vunpack.c.l.b16 %v560
    %v845 = vunpack.c.h.b16 %v560
    %v846 = vunpack.c.l.b16 %v561
    %v847 = vunpack.c.h.b16 %v561
    %v848 = vpack.c.b16 %v844, %v844
    %v849 = vpack.c.b16 %v845, %v845
    %v850 = vpack.c.b16 %v846, %v846
    %v851 = vpack.c.b16 %v847, %v847
    %856 = vmatpush.bf16.msra.mxu0 %v733
    %857 = vmatpush.bf16.msra.mxu0 %v732
    %858 = vmatpush.bf16.msra.mxu0 %v731
    %859 = vmatpush.bf16.msra.mxu0 %v730
    %860 = vmatpush.bf16.msra.mxu0 %v729
    %861 = vmatpush.bf16.msra.mxu0 %v728
    %862 = vmatpush.bf16.msra.mxu0 %v727
    %863 = vmatpush.bf16.msra.mxu0 %v726
    %864 = vmatmul.bf16.gmra.mxu0 %v848
    %v865 = vpop.f32.mrf.mxu0
    %v866 = vadd.f32 %v839, %v865
    %v867 = vpop.f32.mrf.mxu0
    %868 = vdwg.mxu0
    %869 = vmatpush.bf16.msra.mxu0 %v741
    %870 = vmatpush.bf16.msra.mxu0 %v740
    %871 = vmatpush.bf16.msra.mxu0 %v739
    %872 = vmatpush.bf16.msra.mxu0 %v738
    %873 = vmatpush.bf16.msra.mxu0 %v737
    %874 = vmatpush.bf16.msra.mxu0 %v736
    %875 = vmatpush.bf16.msra.mxu0 %v735
    %876 = vmatpush.bf16.msra.mxu0 %v734
    %877 = vmatmul.bf16.gmra.mxu0 %v849
    %v878 = vpop.f32.mrf.mxu0
    %v879 = vadd.f32 %v866, %v878
    %v880 = vpop.f32.mrf.mxu0
    %881 = vdwg.mxu0
    %882 = vmatpush.bf16.msra.mxu0 %v749
    %883 = vmatpush.bf16.msra.mxu0 %v748
    %884 = vmatpush.bf16.msra.mxu0 %v747
    %885 = vmatpush.bf16.msra.mxu0 %v746
    %886 = vmatpush.bf16.msra.mxu0 %v745
    %887 = vmatpush.bf16.msra.mxu0 %v744
    %888 = vmatpush.bf16.msra.mxu0 %v743
    %889 = vmatpush.bf16.msra.mxu0 %v742
    %890 = vmatmul.bf16.gmra.mxu0 %v850
    %v891 = vpop.f32.mrf.mxu0
    %v892 = vadd.f32 %v879, %v891
    %v893 = vpop.f32.mrf.mxu0
    %894 = vdwg.mxu0
    %895 = vmatpush.bf16.msra.mxu0 %v757
    %896 = vmatpush.bf16.msra.mxu0 %v756
    %897 = vmatpush.bf16.msra.mxu0 %v755
    %898 = vmatpush.bf16.msra.mxu0 %v754
    %899 = vmatpush.bf16.msra.mxu0 %v753
    %900 = vmatpush.bf16.msra.mxu0 %v752
    %901 = vmatpush.bf16.msra.mxu0 %v751
    %902 = vmatpush.bf16.msra.mxu0 %v750
    %903 = vmatmul.bf16.gmra.mxu0 %v851
    %v904 = vpop.f32.mrf.mxu0
    %v905 = vadd.f32 %v892, %v904
    %v906 = vpop.f32.mrf.mxu0
    %907 = vdwg.mxu0
    %908 = vmatpush.bf16.msra.mxu0 %v733
    %909 = vmatpush.bf16.msra.mxu0 %v732
    %910 = vmatpush.bf16.msra.mxu0 %v731
    %911 = vmatpush.bf16.msra.mxu0 %v730
    %912 = vmatpush.bf16.msra.mxu0 %v729
    %913 = vmatpush.bf16.msra.mxu0 %v728
    %914 = vmatpush.bf16.msra.mxu0 %v727
    %915 = vmatpush.bf16.msra.mxu0 %v726
    %916 = vmatmul.bf16.gmra.mxu0 %v580
    %v917 = vpop.f32.mrf.mxu0
    %v918 = vadd.f32 0.0, %v917
    %v919 = vpop.f32.mrf.mxu0
    %920 = vdwg.mxu0
    %921 = vmatpush.bf16.msra.mxu0 %v741
    %922 = vmatpush.bf16.msra.mxu0 %v740
    %923 = vmatpush.bf16.msra.mxu0 %v739
    %924 = vmatpush.bf16.msra.mxu0 %v738
    %925 = vmatpush.bf16.msra.mxu0 %v737
    %926 = vmatpush.bf16.msra.mxu0 %v736
    %927 = vmatpush.bf16.msra.mxu0 %v735
    %928 = vmatpush.bf16.msra.mxu0 %v734
    %929 = vmatmul.bf16.gmra.mxu0 %v581
    %v930 = vpop.f32.mrf.mxu0
    %v931 = vadd.f32 %v918, %v930
    %v932 = vpop.f32.mrf.mxu0
    %933 = vdwg.mxu0
    %934 = vmatpush.bf16.msra.mxu0 %v749
    %935 = vmatpush.bf16.msra.mxu0 %v748
    %936 = vmatpush.bf16.msra.mxu0 %v747
    %937 = vmatpush.bf16.msra.mxu0 %v746
    %938 = vmatpush.bf16.msra.mxu0 %v745
    %939 = vmatpush.bf16.msra.mxu0 %v744
    %940 = vmatpush.bf16.msra.mxu0 %v743
    %941 = vmatpush.bf16.msra.mxu0 %v742
    %942 = vmatmul.bf16.gmra.mxu0 %v582
    %v943 = vpop.f32.mrf.mxu0
    %v944 = vadd.f32 %v931, %v943
    %v945 = vpop.f32.mrf.mxu0
    %946 = vdwg.mxu0
    %947 = vmatpush.bf16.msra.mxu0 %v757
    %948 = vmatpush.bf16.msra.mxu0 %v756
    %949 = vmatpush.bf16.msra.mxu0 %v755
    %950 = vmatpush.bf16.msra.mxu0 %v754
    %951 = vmatpush.bf16.msra.mxu0 %v753
    %952 = vmatpush.bf16.msra.mxu0 %v752
    %953 = vmatpush.bf16.msra.mxu0 %v751
    %954 = vmatpush.bf16.msra.mxu0 %v750
    %955 = vmatmul.bf16.gmra.mxu0 %v583
    %v956 = vpop.f32.mrf.mxu0
    %v957 = vadd.f32 %v944, %v956
    %v958 = vpop.f32.mrf.mxu0
    %959 = vdwg.mxu0
    %v960 = vadd.f32 %v905, %v957
    %961 = vst [vmem:[#allocation4] sm:$0x3f] %v960
    // Predicated region
    $region18: #{tpu_custom_call.1} parent=1 // pred_check
      _
    $region19: #{tpu_custom_call.1} parent=1 // pred_check_branch
      %963 = sbr.rel (0) target = $region21
    $region20: #{tpu_custom_call.1} parent=1 // pred_region
      %965 = vsyncadd [#allocation3], 0
      %s967 = sshll.u32 [#allocation2], 4
      %s968 = int_to_ptr.vmem [resolvable:$true] %s967
      %s969 = sshll.u32 %s4, 4
      %s970 = int_to_ptr.hbm [resolvable:$true] %s969
      %972 = dma.vmem_to_hbm [thread:$0]  %s968, 128, %s970, [#allocation3]
    $region21: #{tpu_custom_call.1} parent=1 // pred_fallthru
      _
    // Predicated region
    $region22: #{tpu_custom_call.1} parent=1 // pred_check
      _
    $region23: #{tpu_custom_call.1} parent=1 // pred_check_branch
      %974 = sbr.rel (0) target = $region25
    $region24: #{tpu_custom_call.1} parent=1 // pred_region
      %976 = vsyncadd [#allocation5], 0
      %s978 = sshll.u32 [#allocation4], 4
      %s979 = int_to_ptr.vmem [resolvable:$true] %s978
      %s980 = sshll.u32 %s5, 4
      %s981 = int_to_ptr.hbm [resolvable:$true] %s980
      %983 = dma.vmem_to_hbm [thread:$0]  %s979, 128, %s981, [#allocation5]
    $region25: #{tpu_custom_call.1} parent=1 // pred_fallthru
      _
    // Predicated region
    $region26: #{tpu_custom_call.1} parent=1 // pred_check
      _
    $region27: #{tpu_custom_call.1} parent=1 // pred_check_branch
      %985 = sbr.rel (0) target = $region29
    $region28: #{tpu_custom_call.1} parent=1 // pred_region
      %987 = dma.done [#allocation3], 128
    $region29: #{tpu_custom_call.1} parent=1 // pred_fallthru
      _
    // Predicated region
    $region30: #{tpu_custom_call.1} parent=1 // pred_check
      _
    $region31: #{tpu_custom_call.1} parent=1 // pred_check_branch
      %989 = sbr.rel (0) target = $region33
    $region32: #{tpu_custom_call.1} parent=1 // pred_region
      %991 = dma.done [#allocation5], 128
    $region33: #{tpu_custom_call.1} parent=1 // pred_fallthru
      _
    %992 = vsyncpa [#allocation3], 1
    %993 = vsyncpa [#allocation5], 1

</llo_original>
